<compile_context>
chip_gen: v5e
topology: v5e:2x2
jax: 0.10.0
libtpu: 0.0.40
codegen_flags: <defaults>
</compile_context>

<pallas_src>
import functools

import jax
import jax.numpy as jnp
from jax.experimental import pallas as pl
from jax.experimental.pallas import tpu as pltpu


def _round_up(x, m):
    return ((x + m - 1) // m) * m


def _vmem_capacity_bytes():
    """Physical VMEM per TensorCore; conservative fallback if unavailable."""
    try:
        info = pltpu.get_tpu_info()
        cap = getattr(info, "vmem_capacity_bytes", None)
        if cap:
            return int(cap)
    except Exception:
        pass
    return 64 * 1024 * 1024  # v7x per-core VMEM (smallest of v5e/v6e/v7x)


def _afl_partials_kernel(
    logits_ref,       # [TB, C]   logits tile (streamed over the batch)
    tgt_ref,          # [TB, 1]   int32 targets tile (streamed)
    counts_ref,       # [1, 1, C] output block p: per-core class-count partials
    s_ref,            # [1, 1, C] output block p: per-core focal partial sums
    *,
    n_valid,          # static: true batch size N
    tiles_per_core,   # static: tiles along the "arbitrary" axis per parallel slice
    gamma,            # static: base focusing parameter
):
    i = pl.program_id(1)
    tb, c = logits_ref.shape

    # Output blocks are indexed only by the parallel axis, so they stay
    # VMEM-resident across the "arbitrary" axis and act as the accumulators.
    @pl.when(i == 0)
    def _init():
        counts_ref[...] = jnp.zeros_like(counts_ref)
        s_ref[...] = jnp.zeros_like(s_ref)

    logits = logits_ref[...].astype(jnp.float32)                   # [TB, C]
    tgt = tgt_ref[...]                                             # [TB, 1] int32

    # Global row ids from the *unclamped* linear tile index. Rows past N
    # (partial last block and fully-duplicated clamped grid-padding tiles)
    # are masked out below.
    tile = pl.program_id(0) * tiles_per_core + i
    row_ids = tile * tb + jax.lax.broadcasted_iota(jnp.int32, (tb, 1), 0)
    valid = row_ids < n_valid                                      # [TB, 1] bool

    # Masked one-hot of targets. jnp.where (not multiply-by-mask) so Inf/NaN
    # garbage in the unpadded OOB tail can never reach the accumulators.
    class_ids = jax.lax.broadcasted_iota(jnp.int32, (tb, c), 1)
    onehot = jnp.where(jnp.logical_and(valid, class_ids == tgt), 1.0, 0.0)

    # Numerically-stable per-sample cross entropy: ce = logsumexp - logit[target].
    m = jnp.max(logits, axis=-1, keepdims=True)
    lse = m + jnp.log(jnp.sum(jnp.exp(logits - m), axis=-1, keepdims=True))
    logit_t = jnp.sum(logits * onehot, axis=-1, keepdims=True)     # [TB, 1]
    ce = lse - logit_t                                             # >= 0 for valid rows

    pt = jnp.exp(-ce)
    omp = 1.0 - pt                                                 # in [0, 1]
    g = gamma * omp                                                # per-sample exponent
    # omp ** g with the 0 ** 0 == 1 convention (matches torch.pow).
    pow_omp = jnp.exp(g * jnp.log(jnp.maximum(omp, 1e-30)))
    w = jnp.where(valid, pow_omp * ce, 0.0)                        # [TB, 1], NaN-safe

    counts_ref[...] += jnp.sum(onehot, axis=0, keepdims=True)[None]      # [1,1,C]
    s_ref[...] += jnp.sum(onehot * w, axis=0, keepdims=True)[None]       # [1,1,C]


def adaptive_focal_loss(
    logits,                 # [N, C] predicted logits
    targets,                # [N]    int class labels
    class_counts=None,      # [C]    previous class_counts buffer (defaults to zeros)
    total_samples=None,     # []     previous total_samples buffer (defaults to 0)
    *,
    gamma=2.0,
    eps=1e-6,
    reduction="mean",
    max_block_rows=None,    # optional cap on the batch tile (mainly for testing)
    num_parallel=2,         # leading "parallel" grid axis (2 TCs on v7x; harmless on 1-TC chips)
):
    """Returns (loss, alpha, new_class_counts, new_total_samples)."""
    assert reduction in ("mean", "sum")
    n, c = logits.shape
    assert targets.shape == (n,)

    if class_counts is None:
        class_counts = jnp.zeros((c,), jnp.float32)
    if total_samples is None:
        total_samples = jnp.zeros((), jnp.float32)
    prev_counts = class_counts.astype(jnp.float32)
    prev_total = total_samples.astype(jnp.float32)

    def _finalize(counts_delta, s):
        # Tiny O(C) epilogue in plain JAX (combines per-core partials).
        counts = prev_counts + counts_delta
        total = prev_total + jnp.float32(n)
        class_freq = counts / (total + eps)
        effective_num = 1.0 - jnp.power(jnp.float32(0.999), counts)
        weights = (1.0 - class_freq) / (effective_num + eps)
        alpha = weights / jnp.sum(weights)
        loss = jnp.sum(alpha * s)
        if reduction == "mean":
            loss = loss / jnp.float32(max(n, 1))   # guard N == 0
        return loss, alpha, counts, total

    if n == 0:
        # Empty batch: counts unchanged, zero loss (torch would return NaN mean).
        zc = jnp.zeros((c,), jnp.float32)
        return _finalize(zc, zc)

    # ---- tile sizing ---------------------------------------------------------
    itemsize = jnp.dtype(logits.dtype).itemsize
    c_pad = _round_up(c, 128)                 # VMEM lane padding of the class dim
    vmem_cap = _vmem_capacity_bytes()
    per_buf_budget = max(2 << 20, min(vmem_cap // 8, 12 << 20))
    # Per-row VMEM footprint of the two streamed inputs (logits tile is
    # lane-padded to c_pad; the (TB, 1) int32 target tile is lane-padded to 128).
    row_bytes = c_pad * itemsize + 128 * 4
    tb = per_buf_budget // row_bytes
    if max_block_rows is not None:
        tb = min(tb, int(max_block_rows))
    tb = min(tb, 8192)
    if tb >= n:
        tb = n                                # single full-extent block
    else:
        tb = max(8, (tb // 8) * 8)            # (8, 128) sublane constraint

    num_tiles = pl.cdiv(n, tb)
    p_dim = max(1, min(int(num_parallel), num_tiles))
    tiles_per_core = pl.cdiv(num_tiles, p_dim)
    last_tile = num_tiles - 1

    targets_2d = targets.astype(jnp.int32).reshape(n, 1)

    def _in_map(p, i):
        # Clamp so rectangular-grid padding tiles re-read the last valid block
        # (their contribution is masked in-kernel via the unclamped row ids).
        return (jnp.minimum(p * tiles_per_core + i, last_tile), 0)

    kernel = functools.partial(
        _afl_partials_kernel,
        n_valid=n, tiles_per_core=tiles_per_core, gamma=float(gamma))

    # Explicit, generation-safe VMEM budget: double-buffered streams + partials.
    est_vmem = 2 * tb * row_bytes + 4 * 8 * c_pad * 4
    vmem_limit = int(min(max(est_vmem * 5 // 4 + (2 << 20), 16 << 20),
                         vmem_cap * 3 // 4))

    counts_part, s_part = pl.pallas_call(
        kernel,
        out_shape=(
            jax.ShapeDtypeStruct((p_dim, 1, c), jnp.float32),   # per-core count partials
            jax.ShapeDtypeStruct((p_dim, 1, c), jnp.float32),   # per-core focal partials
        ),
        grid_spec=pltpu.PrefetchScalarGridSpec(
            num_scalar_prefetch=0,
            grid=(p_dim, tiles_per_core),
            in_specs=[
                pl.BlockSpec((tb, c), _in_map),   # logits tile (streamed, native dtype)
                pl.BlockSpec((tb, 1), _in_map),   # targets tile (streamed)
            ],
            out_specs=(
                pl.BlockSpec((1, 1, c), lambda p, i: (p, 0, 0)),
                pl.BlockSpec((1, 1, c), lambda p, i: (p, 0, 0)),
            ),
        ),
        compiler_params=pltpu.CompilerParams(
            # Batch split across cores; tile axis feeds resident accumulators.
            dimension_semantics=("parallel", "arbitrary"),
            vmem_limit_bytes=vmem_limit,
        ),
    )(logits, targets_2d)

    counts_delta = jnp.sum(counts_part, axis=(0, 1))
    s = jnp.sum(s_part, axis=(0, 1))
    return _finalize(counts_delta, s)


def adaptive_focal_loss_ref(logits, targets, class_counts, total_samples,
                            gamma=2.0, eps=1e-6, reduction="mean"):
    """Pure-JAX reference mirroring the PyTorch forward (incl. weight update)."""
    n, c = logits.shape
    counts = class_counts + jnp.sum(
        jax.nn.one_hot(targets, c, dtype=jnp.float32), axis=0)
    total = total_samples + n
    class_freq = counts / (total + eps)
    effective_num = 1.0 - jnp.power(jnp.float32(0.999), counts)
    weights = (1.0 - class_freq) / (effective_num + eps)
    alpha = weights / jnp.sum(weights)

    logp = jax.nn.log_softmax(logits.astype(jnp.float32), axis=-1)
    ce = -jnp.take_along_axis(logp, targets[:, None], axis=1)[:, 0]
    pt = jnp.exp(-ce)
    g = gamma * (1.0 - pt)
    focal = alpha[targets] * jnp.power(1.0 - pt, g) * ce
    loss = focal.mean() if reduction == "mean" else focal.sum()
    return loss, alpha, counts


if __name__ == "__main__":
    # Small deterministic shapes: N=100 samples, num_classes=16.
    N, C = 100, 16
    gamma = 2.0

    key = jax.random.PRNGKey(0)
    kx, kt = jax.random.split(key, 2)
    logits = jax.random.normal(kx, (N, C), dtype=jnp.float32)
    targets = jax.random.randint(kt, (N,), 0, C, dtype=jnp.int32)

    ref_loss, ref_alpha, ref_counts = adaptive_focal_loss_ref(
        logits, targets, jnp.zeros((C,), jnp.float32), jnp.float32(0.0),
        gamma=gamma, reduction="mean")

    # (1) Multi-tile + parallel split; grid exactly covers the batch (4 tiles, P=2).
    loss, alpha, counts, total = adaptive_focal_loss(
        logits, targets, gamma=gamma, reduction="mean", max_block_rows=32)
    loss = jax.block_until_ready(loss)
    assert loss.shape == ()
    assert jnp.allclose(loss, ref_loss, atol=1e-5, rtol=1e-5)
    assert jnp.allclose(alpha, ref_alpha, atol=1e-5, rtol=1e-5)
    assert jnp.allclose(counts, ref_counts, atol=1e-5, rtol=1e-5)
    assert jnp.allclose(total, jnp.float32(N))

    # (2) Uneven split: 3 real tiles over a (2, 2) grid -> one clamped/masked tile.
    loss2, alpha2, counts2, _ = adaptive_focal_loss(
        logits, targets, gamma=gamma, reduction="mean", max_block_rows=40)
    jax.block_until_ready(loss2)
    assert jnp.allclose(loss2, ref_loss, atol=1e-5, rtol=1e-5)
    assert jnp.allclose(counts2, ref_counts, atol=1e-5, rtol=1e-5)

    # (3) Auto-sized single tile, then a second call carrying the updated buffers.
    loss3, alpha3, counts3, total3 = adaptive_focal_loss(
        logits, targets, gamma=gamma, reduction="mean")
    loss4, alpha4, counts4, total4 = adaptive_focal_loss(
        logits, targets, counts3, total3, gamma=gamma, reduction="mean",
        max_block_rows=32)
    jax.block_until_ready(loss4)
    ref_loss2, ref_alpha2, ref_counts2 = adaptive_focal_loss_ref(
        logits, targets, ref_counts, jnp.float32(N), gamma=gamma, reduction="mean")
    assert jnp.allclose(loss3, ref_loss, atol=1e-5, rtol=1e-5)
    assert jnp.allclose(loss4, ref_loss2, atol=1e-5, rtol=1e-5)
    assert jnp.allclose(alpha4, ref_alpha2, atol=1e-5, rtol=1e-5)
    assert jnp.allclose(counts4, ref_counts2, atol=1e-5, rtol=1e-5)
    assert jnp.allclose(total4, jnp.float32(2 * N))

    print("KERNEL_OK")
</pallas_src>

<mosaic_0001>
module attributes {stable_mosaic.version = 11 : i64} {
  func.func @_afl_partials_kernel(%arg0: i32, %arg1: i32, %arg2: memref<32x16xf32, #tpu.memory_space<vmem>>, %arg3: memref<32x1xi32, #tpu.memory_space<vmem>>, %arg4: memref<1x1x16xf32, #tpu.memory_space<vmem>>, %arg5: memref<1x1x16xf32, #tpu.memory_space<vmem>>) attributes {dimension_semantics = [#tpu.dimension_semantics<parallel>, #tpu.dimension_semantics<arbitrary>], iteration_bounds = array<i64: 2, 2>, scalar_prefetch = 0 : i64, scratch_operands = 0 : i64, tpu.core_type = #tpu.core_type<tc>, window_params = [{transform_indices = @transform_0, window_bounds = array<i64: 32, 16>}, {transform_indices = @transform_1, window_bounds = array<i64: 32, 1>}, {transform_indices = @transform_2, window_bounds = array<i64: 1, 1, 16>}, {transform_indices = @transform_3, window_bounds = array<i64: 1, 1, 16>}]} {
    %c0_i32 = arith.constant 0 : i32
    %0 = arith.cmpi eq, %arg1, %c0_i32 : i32
    %1 = arith.extui %0 : i1 to i32
    %c0_i32_0 = arith.constant 0 : i32
    %2 = arith.cmpi ne, %1, %c0_i32_0 : i32
    scf.if %2 {
      %cst_27 = arith.constant 0.000000e+00 : f32
      %63 = vector.broadcast %cst_27 : f32 to vector<1x1x16xf32>
      %c0_28 = arith.constant 0 : index
      %c0_29 = arith.constant 0 : index
      %c0_30 = arith.constant 0 : index
      %64 = vector.load %arg4[%c0_28, %c0_29, %c0_30] : memref<1x1x16xf32, #tpu.memory_space<vmem>>, vector<1x1x16xf32>
      tpu.vector_store %arg4[%c0_28, %c0_29, %c0_30], %63 {strides = array<i32>} : memref<1x1x16xf32, #tpu.memory_space<vmem>>, vector<1x1x16xf32>,
      %cst_31 = arith.constant 0.000000e+00 : f32
      %65 = vector.broadcast %cst_31 : f32 to vector<1x1x16xf32>
      %c0_32 = arith.constant 0 : index
      %c0_33 = arith.constant 0 : index
      %c0_34 = arith.constant 0 : index
      %66 = vector.load %arg5[%c0_32, %c0_33, %c0_34] : memref<1x1x16xf32, #tpu.memory_space<vmem>>, vector<1x1x16xf32>
      tpu.vector_store %arg5[%c0_32, %c0_33, %c0_34], %65 {strides = array<i32>} : memref<1x1x16xf32, #tpu.memory_space<vmem>>, vector<1x1x16xf32>,
    } else {
    }
    %c0 = arith.constant 0 : index
    %c0_1 = arith.constant 0 : index
    %3 = vector.load %arg2[%c0, %c0_1] : memref<32x16xf32, #tpu.memory_space<vmem>>, vector<32x16xf32>
    %c0_2 = arith.constant 0 : index
    %c0_3 = arith.constant 0 : index
    %4 = vector.load %arg3[%c0_2, %c0_3] : memref<32x1xi32, #tpu.memory_space<vmem>>, vector<32x1xi32>
    %c2_i32 = arith.constant 2 : i32
    %5 = arith.muli %arg0, %c2_i32 : i32
    %6 = arith.addi %5, %arg1 : i32
    %c32_i32 = arith.constant 32 : i32
    %7 = arith.muli %6, %c32_i32 : i32
    %8 = tpu.iota {dimensions = array<i32: 0>} : vector<32x1xi32>
    %9 = vector.broadcast %7 : i32 to vector<32x1xi32>
    %10 = arith.addi %9, %8 : vector<32x1xi32>
    %c100_i32 = arith.constant 100 : i32
    %11 = vector.broadcast %c100_i32 : i32 to vector<32x1xi32>
    %12 = arith.cmpi slt, %10, %11 : vector<32x1xi32>
    %13 = tpu.iota {dimensions = array<i32: 1>} : vector<32x16xi32>
    %14 = vector.broadcast %4 : vector<32x1xi32> to vector<32x16xi32>
    %15 = arith.cmpi eq, %13, %14 : vector<32x16xi32>
    %16 = vector.broadcast %12 : vector<32x1xi1> to vector<32x16xi1>
    %17 = arith.andi %16, %15 : vector<32x16xi1>
    %cst = arith.constant 1.000000e+00 : f32
    %cst_4 = arith.constant 0.000000e+00 : f32
    %18 = vector.broadcast %cst : f32 to vector<32x16xf32>
    %19 = vector.broadcast %cst_4 : f32 to vector<32x16xf32>
    %20 = arith.select %17, %18, %19 : vector<32x16xi1>, vector<32x16xf32>
    %cst_5 = arith.constant dense<0xFF800000> : vector<32xf32>
    %21 = vector.multi_reduction <maximumf>, %3, %cst_5 [1] : vector<32x16xf32> to vector<32xf32>
    %22 = vector.shape_cast %21 : vector<32xf32> to vector<32x1xf32>
    %23 = vector.broadcast %22 : vector<32x1xf32> to vector<32x16xf32>
    %24 = arith.subf %3, %23 : vector<32x16xf32>
    %25 = math.exp %24 : vector<32x16xf32>
    %cst_6 = arith.constant dense<0.000000e+00> : vector<32xf32>
    %26 = vector.multi_reduction <add>, %25, %cst_6 [1] : vector<32x16xf32> to vector<32xf32>
    %27 = vector.shape_cast %26 : vector<32xf32> to vector<32x1xf32>
    %28 = math.log %27 : vector<32x1xf32>
    %29 = arith.addf %22, %28 : vector<32x1xf32>
    %30 = arith.mulf %3, %20 : vector<32x16xf32>
    %cst_7 = arith.constant dense<0.000000e+00> : vector<32xf32>
    %31 = vector.multi_reduction <add>, %30, %cst_7 [1] : vector<32x16xf32> to vector<32xf32>
    %32 = vector.shape_cast %31 : vector<32xf32> to vector<32x1xf32>
    %33 = arith.subf %29, %32 : vector<32x1xf32>
    %cst_8 = arith.constant 0.000000e+00 : f32
    %34 = vector.broadcast %cst_8 : f32 to vector<32x1xf32>
    %35 = arith.subf %34, %33 : vector<32x1xf32>
    %36 = math.exp %35 : vector<32x1xf32>
    %cst_9 = arith.constant 1.000000e+00 : f32
    %37 = vector.broadcast %cst_9 : f32 to vector<32x1xf32>
    %38 = arith.subf %37, %36 : vector<32x1xf32>
    %cst_10 = arith.constant 2.000000e+00 : f32
    %39 = vector.broadcast %cst_10 : f32 to vector<32x1xf32>
    %40 = arith.mulf %39, %38 : vector<32x1xf32>
    %cst_11 = arith.constant 1.000000e-30 : f32
    %41 = vector.broadcast %cst_11 : f32 to vector<32x1xf32>
    %42 = arith.maximumf %38, %41 : vector<32x1xf32>
    %43 = math.log %42 : vector<32x1xf32>
    %44 = arith.mulf %40, %43 : vector<32x1xf32>
    %45 = math.exp %44 : vector<32x1xf32>
    %46 = arith.mulf %45, %33 : vector<32x1xf32>
    %cst_12 = arith.constant 0.000000e+00 : f32
    %47 = vector.broadcast %cst_12 : f32 to vector<32x1xf32>
    %48 = arith.select %12, %46, %47 : vector<32x1xi1>, vector<32x1xf32>
    %c0_13 = arith.constant 0 : index
    %c0_14 = arith.constant 0 : index
    %c0_15 = arith.constant 0 : index
    %49 = vector.load %arg4[%c0_13, %c0_14, %c0_15] : memref<1x1x16xf32, #tpu.memory_space<vmem>>, vector<1x1x16xf32>
    %cst_16 = arith.constant dense<0.000000e+00> : vector<16xf32>
    %50 = vector.multi_reduction <add>, %20, %cst_16 [0] : vector<32x16xf32> to vector<16xf32>
    %51 = vector.shape_cast %50 : vector<16xf32> to vector<1x16xf32>
    %52 = vector.shape_cast %51 : vector<1x16xf32> to vector<1x1x16xf32>
    %53 = arith.addf %49, %52 : vector<1x1x16xf32>
    %c0_17 = arith.constant 0 : index
    %c0_18 = arith.constant 0 : index
    %c0_19 = arith.constant 0 : index
    %54 = vector.load %arg4[%c0_17, %c0_18, %c0_19] : memref<1x1x16xf32, #tpu.memory_space<vmem>>, vector<1x1x16xf32>
    tpu.vector_store %arg4[%c0_17, %c0_18, %c0_19], %53 {strides = array<i32>} : memref<1x1x16xf32, #tpu.memory_space<vmem>>, vector<1x1x16xf32>,
    %c0_20 = arith.constant 0 : index
    %c0_21 = arith.constant 0 : index
    %c0_22 = arith.constant 0 : index
    %55 = vector.load %arg5[%c0_20, %c0_21, %c0_22] : memref<1x1x16xf32, #tpu.memory_space<vmem>>, vector<1x1x16xf32>
    %56 = vector.broadcast %48 : vector<32x1xf32> to vector<32x16xf32>
    %57 = arith.mulf %20, %56 : vector<32x16xf32>
    %cst_23 = arith.constant dense<0.000000e+00> : vector<16xf32>
    %58 = vector.multi_reduction <add>, %57, %cst_23 [0] : vector<32x16xf32> to vector<16xf32>
    %59 = vector.shape_cast %58 : vector<16xf32> to vector<1x16xf32>
    %60 = vector.shape_cast %59 : vector<1x16xf32> to vector<1x1x16xf32>
    %61 = arith.addf %55, %60 : vector<1x1x16xf32>
    %c0_24 = arith.constant 0 : index
    %c0_25 = arith.constant 0 : index
    %c0_26 = arith.constant 0 : index
    %62 = vector.load %arg5[%c0_24, %c0_25, %c0_26] : memref<1x1x16xf32, #tpu.memory_space<vmem>>, vector<1x1x16xf32>
    tpu.vector_store %arg5[%c0_24, %c0_25, %c0_26], %61 {strides = array<i32>} : memref<1x1x16xf32, #tpu.memory_space<vmem>>, vector<1x1x16xf32>,
    return
  }
  func.func @transform_0(%arg0: i32, %arg1: i32) -> (i32, i32) {
    %c2_i32 = arith.constant 2 : i32
    %0 = arith.muli %arg0, %c2_i32 : i32
    %1 = arith.addi %0, %arg1 : i32
    %c3_i32 = arith.constant 3 : i32
    %2 = arith.minsi %1, %c3_i32 : i32
    %c0_i32 = arith.constant 0 : i32
    %c0_i32_0 = arith.constant 0 : i32
    return %2, %c0_i32 : i32, i32
  }
  func.func @transform_1(%arg0: i32, %arg1: i32) -> (i32, i32) {
    %c2_i32 = arith.constant 2 : i32
    %0 = arith.muli %arg0, %c2_i32 : i32
    %1 = arith.addi %0, %arg1 : i32
    %c3_i32 = arith.constant 3 : i32
    %2 = arith.minsi %1, %c3_i32 : i32
    %c0_i32 = arith.constant 0 : i32
    %c0_i32_0 = arith.constant 0 : i32
    return %2, %c0_i32 : i32, i32
  }
  func.func @transform_2(%arg0: i32, %arg1: i32) -> (i32, i32, i32) {
    %c0_i32 = arith.constant 0 : i32
    %c0_i32_0 = arith.constant 0 : i32
    %c0_i32_1 = arith.constant 0 : i32
    return %arg0, %c0_i32, %c0_i32_0 : i32, i32, i32
  }
  func.func @transform_3(%arg0: i32, %arg1: i32) -> (i32, i32, i32) {
    %c0_i32 = arith.constant 0 : i32
    %c0_i32_0 = arith.constant 0 : i32
    %c0_i32_1 = arith.constant 0 : i32
    return %arg0, %c0_i32, %c0_i32_0 : i32, i32, i32
  }
}

</mosaic_0001>

<llo_original>
// kernel: tpu_custom_call.1
$region0: #{tpu_custom_call.1}
  #allocation0 [shape = 'u32[]', space=smem, size = 0x4, offset = 0x4, fixed_abs, tag = 'smem constant byte address 0x4 - core index']
  #allocation1 [shape = 'u32[72,128]{1,0:T(1,128)}', space=vmem, size = 0x9000, scoped, tag = 'internal scratch']
  %s0 = inlined_call_operand.vmem [shape: f32[100,16], index: 0, kind: input, shape index: {}]
  %s1 = inlined_call_operand.vmem [shape: s32[100,1], index: 1, kind: input, shape index: {}]
  %s2 = inlined_call_operand.hbm [shape: f32[2,1,16], index: 2, kind: output, shape index: {0}]
  %s3 = inlined_call_operand.hbm [shape: f32[2,1,16], index: 3, kind: output, shape index: {1}]
  %4 = xla_tuple %s2, %s3
  %s5 = sld [smem:[#allocation0]]
  $region53: #{tpu_custom_call.1} parent=0
    _
  %s7 = ssub.s32 1, %s5
  %s8 = scalar_select 0, %s7, %s5
  $region1: #{tpu_custom_call.1} parent=0
    #allocation2 [shape = 'u8[1024]{0}', space=vmem, size = 0x400, scoped, tag = 'output window, operand 0']
    #allocation3 [shape = 's32[2]{0}', space=sflag, size = 0x8, scoped, tag = 'scoped memory for tpu_custom_call.1']
    #allocation4 [shape = 'u8[1024]{0}', space=vmem, size = 0x400, scoped, tag = 'output window, operand 1']
    #allocation5 [shape = 's32[2]{0}', space=sflag, size = 0x8, scoped, tag = 'scoped memory for tpu_custom_call.1']
    %9 = vsyncpa [#allocation3], 0
    %s10 = scalar_lea.sflag [#allocation3], 1
    %11 = vsyncpa %s10, 0
    %12 = vsyncpa [#allocation5], 0
    %s13 = scalar_lea.sflag [#allocation5], 1
    %14 = vsyncpa %s13, 0
    loop: start=0, step=1, limit=6
    $region2: #{tpu_custom_call.1} parent=1 // loop_pre_header
      _
    $region3: #{tpu_custom_call.1} parent=1 // loop_header
      %s16 = sphi 0, %s20
      %p17 = scmp.ge.s32.totalorder %s16, 6
      %s23 = sphi 0, %s35
      %s24 = sphi 0, %s31
      %s25 = sphi 0, %s23
      %s26 = sphi 0, %s24
      %s27 = sphi 0, %s25
      %s28 = sphi 0, %s26
      %s46 = sphi 0, %s48
      %s49 = sphi 0, %s46
      %s50 = sphi 0, %s49
      %s66 = sphi 0, %s50
      %s80 = sphi 0, %s82
      %s83 = sphi 0, %s80
      %s84 = sphi 0, %s83
      %s100 = sphi 0, %s84
      %s106 = sphi 0, %s108
      %s109 = sphi 0, %s106
      %s110 = sphi 0, %s109
      %s126 = sphi 0, %s110
      %s132 = sphi 0, %s134
      %s135 = sphi 0, %s132
      %s136 = sphi 0, %s135
      %s152 = sphi 0, %s136
    $region4: #{tpu_custom_call.1} parent=1 // loop_header_branch
      %19 = sbr.rel (%p17) target = $region8
    $region5: #{tpu_custom_call.1} parent=1 // loop_body
      %s21 = ssub.s32 %s16, 1
      %s22 = ssub.s32 %s16, 2
      %s29 = sadd.s32 1, %s24
      %p30 = scmp.ge.s32.totalorder %s29, 2
      %s31 = scalar_select %p30, 0, %s29
      %s32 = sadd.s32 1, %s23
      %s33 = scalar_select %p30, %s32, %s23
      %p34 = scmp.ge.s32.totalorder %s33, 2
      %s35 = scalar_select %p34, 0, %s33
      %s36 = smul.u32 %s23, 2
      %s37 = sadd.s32 %s36, %s24
      %p38 = scmp.lt.s32.totalorder %s37, 3
      %s39 = scalar_select %p38, %s37, 3
      %s40 = smul.u32 %s35, 2
      %s41 = sadd.s32 %s40, %s31
      %p42 = scmp.lt.s32.totalorder %s41, 3
      %s43 = scalar_select %p42, %s41, 3
      %s44 = ssub.s32 %s39, %s43
      %p45 = scmp.eq.s32.totalorder %s44, 0
      %s47 = sadd.s32 %s46, 1
      %s48 = scalar_select %p45, %s46, %s47
      %p51 = pneg %p45
      %p52 = scmp.eq.s32.totalorder %s16, 3
      %p53 = por %p51, %p52
      %p54 = scmp.ne.s32.totalorder %s46, %s49
      %p55 = scmp.eq.s32.totalorder %s16, 0
      %p56 = por %p54, %p55
      %p57 = scmp.ne.s32.totalorder %s46, %s49
      %p58 = scmp.eq.s32.totalorder %s21, 3
      %p59 = por %p57, %p58
      %p60 = scmp.ne.s32.totalorder %s49, %s50
      %p61 = scmp.eq.s32.totalorder %s21, 0
      %p62 = por %p60, %p61
      %p63 = scmp.ne.s32.totalorder %s49, %s50
      %p64 = scmp.eq.s32.totalorder %s22, 3
      %p65 = por %p63, %p64
      %p67 = scmp.ne.s32.totalorder %s50, %s66
      %p68 = scmp.eq.s32.totalorder %s22, 0
      %p69 = por %p67, %p68
      %s70 = smul.u32 %s23, 2
      %s71 = sadd.s32 %s70, %s24
      %p72 = scmp.lt.s32.totalorder %s71, 3
      %s73 = scalar_select %p72, %s71, 3
      %s74 = smul.u32 %s35, 2
      %s75 = sadd.s32 %s74, %s31
      %p76 = scmp.lt.s32.totalorder %s75, 3
      %s77 = scalar_select %p76, %s75, 3
      %s78 = ssub.s32 %s73, %s77
      %p79 = scmp.eq.s32.totalorder %s78, 0
      %s81 = sadd.s32 %s80, 1
      %s82 = scalar_select %p79, %s80, %s81
      %p85 = pneg %p79
      %p86 = scmp.eq.s32.totalorder %s16, 3
      %p87 = por %p85, %p86
      %p88 = scmp.ne.s32.totalorder %s80, %s83
      %p89 = scmp.eq.s32.totalorder %s16, 0
      %p90 = por %p88, %p89
      %p91 = scmp.ne.s32.totalorder %s80, %s83
      %p92 = scmp.eq.s32.totalorder %s21, 3
      %p93 = por %p91, %p92
      %p94 = scmp.ne.s32.totalorder %s83, %s84
      %p95 = scmp.eq.s32.totalorder %s21, 0
      %p96 = por %p94, %p95
      %p97 = scmp.ne.s32.totalorder %s83, %s84
      %p98 = scmp.eq.s32.totalorder %s22, 3
      %p99 = por %p97, %p98
      %p101 = scmp.ne.s32.totalorder %s84, %s100
      %p102 = scmp.eq.s32.totalorder %s22, 0
      %p103 = por %p101, %p102
      %s104 = ssub.s32 %s23, %s35
      %p105 = scmp.eq.s32.totalorder %s104, 0
      %s107 = sadd.s32 %s106, 1
      %s108 = scalar_select %p105, %s106, %s107
      %p111 = pneg %p105
      %p112 = scmp.eq.s32.totalorder %s16, 3
      %p113 = por %p111, %p112
      %p114 = scmp.ne.s32.totalorder %s106, %s109
      %p115 = scmp.eq.s32.totalorder %s16, 0
      %p116 = por %p114, %p115
      %p117 = scmp.ne.s32.totalorder %s106, %s109
      %p118 = scmp.eq.s32.totalorder %s21, 3
      %p119 = por %p117, %p118
      %p120 = scmp.ne.s32.totalorder %s109, %s110
      %p121 = scmp.eq.s32.totalorder %s21, 0
      %p122 = por %p120, %p121
      %p123 = scmp.ne.s32.totalorder %s109, %s110
      %p124 = scmp.eq.s32.totalorder %s22, 3
      %p125 = por %p123, %p124
      %p127 = scmp.ne.s32.totalorder %s110, %s126
      %p128 = scmp.eq.s32.totalorder %s22, 0
      %p129 = por %p127, %p128
      %s130 = ssub.s32 %s23, %s35
      %p131 = scmp.eq.s32.totalorder %s130, 0
      %s133 = sadd.s32 %s132, 1
      %s134 = scalar_select %p131, %s132, %s133
      %p137 = pneg %p131
      %p138 = scmp.eq.s32.totalorder %s16, 3
      %p139 = por %p137, %p138
      %p140 = scmp.ne.s32.totalorder %s132, %s135
      %p141 = scmp.eq.s32.totalorder %s16, 0
      %p142 = por %p140, %p141
      %p143 = scmp.ne.s32.totalorder %s132, %s135
      %p144 = scmp.eq.s32.totalorder %s21, 3
      %p145 = por %p143, %p144
      %p146 = scmp.ne.s32.totalorder %s135, %s136
      %p147 = scmp.eq.s32.totalorder %s21, 0
      %p148 = por %p146, %p147
      %p149 = scmp.ne.s32.totalorder %s135, %s136
      %p150 = scmp.eq.s32.totalorder %s22, 3
      %p151 = por %p149, %p150
      %p153 = scmp.ne.s32.totalorder %s136, %s152
      %p154 = scmp.eq.s32.totalorder %s22, 0
      %p155 = por %p153, %p154
      %p156 = scmp.le.s32.totalorder 1, %s16
      %p157 = scmp.lt.s32.totalorder %s16, 5
      %p158 = pnand %p156, %p157
      %p159 = pneg %p158
      // Predicated region
      $region9: #{tpu_custom_call.1} parent=5 // pred_check
        _
      $region10: #{tpu_custom_call.1} parent=5 // pred_check_branch
        %161 = sbr.rel (%p158) target = $region12
      $region11: #{tpu_custom_call.1} parent=5 // pred_region
        %s162 = ssub.s32 %s16, 1
      $region12: #{tpu_custom_call.1} parent=5 // pred_fallthru
        _
      %p163 = scmp.lt.s32.totalorder %s16, 4
      // Predicated region
      $region13: #{tpu_custom_call.1} parent=5 // pred_check
        %p164 = pneg %p163
      $region14: #{tpu_custom_call.1} parent=5 // pred_check_branch
        %166 = sbr.rel (%p164) target = $region16
      $region15: #{tpu_custom_call.1} parent=5 // pred_region
        // Predicated region
        $region17: #{tpu_custom_call.1} parent=15 // pred_check
          %p167 = pneg %p56
        $region18: #{tpu_custom_call.1} parent=15 // pred_check_branch
          %169 = sbr.rel (%p167) target = $region20
        $region19: #{tpu_custom_call.1} parent=15 // pred_region
          %s170 = smul.u32 %s23, 2
          %s171 = sadd.s32 %s170, %s24
          %p172 = scmp.lt.s32.totalorder %s171, 3
          %s173 = scalar_select %p172, %s171, 3
          %s174 = smul.u32 4, %s173
          %s175 = ssub.s32 13, %s174
          %p176 = scmp.lt.s32.totalorder %s175, 4
          %s177 = scalar_select %p176, %s175, 4
          %s178 = smul.u32 8, %s177
          %p179 = scmp.lt.s32.totalorder %s174, 12
          %s180 = scalar_select %p179, %s174, 12
          %s181 = smul.addr %s180, 8
          %s182 = scalar_lea.vmem %s0, %s181
          %s183 = smul.u32 %s23, 2
          %s184 = sadd.s32 %s183, %s24
          %p185 = scmp.lt.s32.totalorder %s184, 3
          %s186 = scalar_select %p185, %s184, 3
          %s187 = smul.u32 4, %s186
          %s188 = ssub.s32 13, %s187
          %p189 = scmp.lt.s32.totalorder %s188, 4
          %s190 = scalar_select %p189, %s188, 4
          %s191 = smul.u32 8, %s190
        $region20: #{tpu_custom_call.1} parent=15 // pred_fallthru
          _
        // Predicated region
        $region21: #{tpu_custom_call.1} parent=15 // pred_check
          %p192 = pneg %p90
        $region22: #{tpu_custom_call.1} parent=15 // pred_check_branch
          %194 = sbr.rel (%p192) target = $region24
        $region23: #{tpu_custom_call.1} parent=15 // pred_region
          %s195 = smul.u32 %s23, 2
          %s196 = sadd.s32 %s195, %s24
          %p197 = scmp.lt.s32.totalorder %s196, 3
          %s198 = scalar_select %p197, %s196, 3
          %s199 = smul.u32 4, %s198
          %s200 = ssub.s32 13, %s199
          %p201 = scmp.lt.s32.totalorder %s200, 4
          %s202 = scalar_select %p201, %s200, 4
          %s203 = smul.u32 8, %s202
          %p204 = scmp.lt.s32.totalorder %s199, 12
          %s205 = scalar_select %p204, %s199, 12
          %s206 = smul.addr %s205, 8
          %s207 = scalar_lea.vmem %s1, %s206
          %s208 = smul.u32 %s23, 2
          %s209 = sadd.s32 %s208, %s24
          %p210 = scmp.lt.s32.totalorder %s209, 3
          %s211 = scalar_select %p210, %s209, 3
          %s212 = smul.u32 4, %s211
          %s213 = ssub.s32 13, %s212
          %p214 = scmp.lt.s32.totalorder %s213, 4
          %s215 = scalar_select %p214, %s213, 4
          %s216 = smul.u32 8, %s215
        $region24: #{tpu_custom_call.1} parent=15 // pred_fallthru
          _
      $region16: #{tpu_custom_call.1} parent=5 // pred_fallthru
        _
      %p217 = scmp.le.s32.totalorder 1, %s16
      %p218 = scmp.lt.s32.totalorder %s16, 5
      %p219 = pnand %p217, %p218
      %p220 = pneg %p219
      // Predicated region
      $region25: #{tpu_custom_call.1} parent=5 // pred_check
        _
      $region26: #{tpu_custom_call.1} parent=5 // pred_check_branch
        %222 = sbr.rel (%p219) target = $region28
      $region27: #{tpu_custom_call.1} parent=5 // pred_region
        %s223 = ssub.s32 %s16, 1
        %s224 = smul.u32 %s25, 2
        %s225 = sadd.s32 %s224, %s26
        %p226 = scmp.lt.s32.totalorder %s225, 3
        %s227 = scalar_select %p226, %s225, 3
        %s228 = smul.u32 4, %s227
        %s229 = ssub.s32 13, %s228
        %p230 = scmp.lt.s32.totalorder %s229, 4
        %s231 = scalar_select %p230, %s229, 4
        %s232 = smul.u32 8, %s231
        %p233 = scmp.lt.s32.totalorder %s228, 12
        %s234 = scalar_select %p233, %s228, 12
        %s235 = smul.addr %s234, 8
        %s236 = scalar_lea.vmem %s0, %s235
        %p237 = pneg %p62
        %p238 = pneg %p59
        %s239 = smul.u32 %s25, 2
        %s240 = sadd.s32 %s239, %s26
        %p241 = scmp.lt.s32.totalorder %s240, 3
        %s242 = scalar_select %p241, %s240, 3
        %s243 = smul.u32 4, %s242
        %s244 = ssub.s32 13, %s243
        %p245 = scmp.lt.s32.totalorder %s244, 4
        %s246 = scalar_select %p245, %s244, 4
        %s247 = smul.u32 8, %s246
        %p248 = scmp.lt.s32.totalorder %s243, 12
        %s249 = scalar_select %p248, %s243, 12
        %s250 = smul.addr %s249, 8
        %s251 = scalar_lea.vmem %s1, %s250
        %p252 = pneg %p96
        %p253 = pneg %p93
        %p254 = pneg %p122
        %p255 = pneg %p119
        %s256 = sand.u32 %s109, 1
        %s257 = scalar_lea.sflag [#allocation3], %s256
        %s258 = sand.u32 %s109, 1
        %s259 = scalar_lea.vmem [#allocation2], %s258
        %p260 = pneg %p148
        %p261 = pneg %p145
        %s262 = sand.u32 %s135, 1
        %s263 = scalar_lea.sflag [#allocation5], %s262
        %s264 = sand.u32 %s135, 1
        %s265 = scalar_lea.vmem [#allocation4], %s264
        %s266 = smul.u32 %s25, 2
        %s267 = sadd.s32 %s266, %s26
        %p268 = scmp.lt.s32.totalorder %s267, 3
        %s269 = scalar_select %p268, %s267, 3
        %s270 = smul.u32 4, %s269
        %s271 = ssub.s32 13, %s270
        %p272 = scmp.lt.s32.totalorder %s271, 4
        %s273 = scalar_select %p272, %s271, 4
        %s274 = smul.u32 8, %s273
        %p275 = scmp.lt.s32.totalorder %s270, 12
        %s276 = scalar_select %p275, %s270, 12
        %s277 = smul.addr %s276, 8
        %s278 = scalar_lea.vmem %s0, %s277
        %s279 = smul.u32 %s25, 2
        %s280 = sadd.s32 %s279, %s26
        %p281 = scmp.lt.s32.totalorder %s280, 3
        %s282 = scalar_select %p281, %s280, 3
        %s283 = smul.u32 4, %s282
        %s284 = ssub.s32 13, %s283
        %p285 = scmp.lt.s32.totalorder %s284, 4
        %s286 = scalar_select %p285, %s284, 4
        %s287 = smul.u32 8, %s286
        %s288 = smul.u32 %s25, 2
        %s289 = sadd.s32 %s288, %s26
        %p290 = scmp.lt.s32.totalorder %s289, 3
        %s291 = scalar_select %p290, %s289, 3
        %s292 = smul.u32 4, %s291
        %s293 = ssub.s32 13, %s292
        %p294 = scmp.lt.s32.totalorder %s293, 4
        %s295 = scalar_select %p294, %s293, 4
        %s296 = smul.u32 8, %s295
        %p297 = scmp.lt.s32.totalorder %s292, 12
        %s298 = scalar_select %p297, %s292, 12
        %s299 = smul.addr %s298, 8
        %s300 = scalar_lea.vmem %s1, %s299
        %s301 = smul.u32 %s25, 2
        %s302 = sadd.s32 %s301, %s26
        %p303 = scmp.lt.s32.totalorder %s302, 3
        %s304 = scalar_select %p303, %s302, 3
        %s305 = smul.u32 4, %s304
        %s306 = ssub.s32 13, %s305
        %p307 = scmp.lt.s32.totalorder %s306, 4
        %s308 = scalar_select %p307, %s306, 4
        %s309 = smul.u32 8, %s308
        %p310 = scmp.eq.s32.totalorder %s26, 0
        // Predicated region
        $region29: #{tpu_custom_call.1} parent=27 // pred_check
          %p311 = pneg %p310
        $region30: #{tpu_custom_call.1} parent=27 // pred_check_branch
          %313 = sbr.rel (%p311) target = $region32
        $region31: #{tpu_custom_call.1} parent=27 // pred_region
          %vm314 = vcmask 122880
          %315 = vst.msk [vmem:[%s259] sm:$0x1] %vm314, 0.0
          %316 = vst.msk [vmem:[%s265] sm:$0x1] %vm314, 0.0
        $region32: #{tpu_custom_call.1} parent=27 // pred_fallthru
          _
        %v317 = vld [vmem:[%s278] sm:$0xff]
        %v318 = vld [vmem:[%s278 + $0x8] sm:$0xff]
        %v319 = vld [vmem:[%s278 + $0x10] sm:$0xff]
        %v320 = vld [vmem:[%s278 + $0x18] sm:$0xff]
        %v321 = vld [vmem:[%s300] sm:$0xff]
        %v322 = vld [vmem:[%s300 + $0x8] sm:$0xff]
        %v323 = vld [vmem:[%s300 + $0x10] sm:$0xff]
        %v324 = vld [vmem:[%s300 + $0x18] sm:$0xff]
        %s325 = smul.u32 %s25, 2
        %s326 = sadd.s32 %s325, %s26
        %s327 = smul.u32 %s326, 32
        %v328 = vlaneseq
        %v329 = vshrl.u32 %v328, 7
        %v330 = vadd.s32 %v329, 8
        %v331 = vadd.s32 %v329, 16
        %v332 = vadd.s32 %v329, 24
        %v333 = vstv %s327
        %v334 = vadd.s32 %v333, %v329
        %v335 = vadd.s32 %v333, %v330
        %v336 = vadd.s32 %v333, %v331
        %v337 = vadd.s32 %v333, %v332
        %vm338 = vcmp.lt.s32.totalorder %v334, 100
        %vm339 = vcmp.lt.s32.totalorder %v335, 100
        %vm340 = vcmp.lt.s32.totalorder %v336, 100
        %vm341 = vcmp.lt.s32.totalorder %v337, 100
        %v342 = vlaneseq
        %v343 = vand.u32 %v342, 127
        %344 = vset.pattern.permute.xlu0 0
        %345 = vperm.xlu0 %344, %v321
        %v346 = vpop.permute.xlu0 %345
        %347 = vset.pattern.permute.xlu0 0
        %348 = vperm.xlu0 %347, %v322
        %v349 = vpop.permute.xlu0 %348
        %350 = vset.pattern.permute.xlu0 0
        %351 = vperm.xlu0 %350, %v323
        %v352 = vpop.permute.xlu0 %351
        %353 = vset.pattern.permute.xlu0 0
        %354 = vperm.xlu0 %353, %v324
        %v355 = vpop.permute.xlu0 %354
        %vm356 = vcmp.eq.s32.totalorder %v343, %v346
        %vm357 = vcmp.eq.s32.totalorder %v343, %v349
        %vm358 = vcmp.eq.s32.totalorder %v343, %v352
        %vm359 = vcmp.eq.s32.totalorder %v343, %v355
        %v360 = vsel %vm338, 1, 0
        %v361 = vsel %vm339, 1, 0
        %v362 = vsel %vm340, 1, 0
        %v363 = vsel %vm341, 1, 0
        %vm364 = vcmp.eq.s32.totalorder %v360, 1
        %vm365 = vcmp.eq.s32.totalorder %v361, 1
        %vm366 = vcmp.eq.s32.totalorder %v362, 1
        %vm367 = vcmp.eq.s32.totalorder %v363, 1
        %vm368 = vmand %vm364, %vm356
        %vm369 = vmand %vm365, %vm357
        %vm370 = vmand %vm366, %vm358
        %vm371 = vmand %vm367, %vm359
        %v372 = vsel %vm368, 1.0, 0.0
        %v373 = vsel %vm369, 1.0, 0.0
        %v374 = vsel %vm370, 1.0, 0.0
        %v375 = vsel %vm371, 1.0, 0.0
        %vm376 = vcmask 130048
        %v377 = vsel %vm376, %v317, -inf
        %378 = vmax.xlane.f32.xlu0 %v377
        %v379 = vpop.xlane.xlu0 %378
        %v380 = vsel %vm376, %v318, -inf
        %381 = vmax.xlane.f32.xlu0 %v380
        %v382 = vpop.xlane.xlu0 %381
        %v383 = vsel %vm376, %v319, -inf
        %384 = vmax.xlane.f32.xlu0 %v383
        %v385 = vpop.xlane.xlu0 %384
        %v386 = vsel %vm376, %v320, -inf
        %387 = vmax.xlane.f32.xlu0 %v386
        %v388 = vpop.xlane.xlu0 %387
        %v389 = vsub.f32 %v317, %v379
        %v390 = vsub.f32 %v318, %v382
        %v391 = vsub.f32 %v319, %v385
        %v392 = vsub.f32 %v320, %v388
        %v393 = vmul.f32 %v389, 1.442695
        %v394 = vpow.pop %v393
        %v395 = vmul.f32 %v390, 1.442695
        %v396 = vpow.pop %v395
        %v397 = vmul.f32 %v391, 1.442695
        %v398 = vpow.pop %v397
        %v399 = vmul.f32 %v392, 1.442695
        %v400 = vpow.pop %v399
        %v401 = vsel %vm376, %v394, 0.0
        %402 = vadd.xlane.f32.xlu0 %v401
        %v403 = vpop.xlane.xlu0 %402
        %v404 = vsel %vm376, %v396, 0.0
        %405 = vadd.xlane.f32.xlu0 %v404
        %v406 = vpop.xlane.xlu0 %405
        %v407 = vsel %vm376, %v398, 0.0
        %408 = vadd.xlane.f32.xlu0 %v407
        %v409 = vpop.xlane.xlu0 %408
        %v410 = vsel %vm376, %v400, 0.0
        %411 = vadd.xlane.f32.xlu0 %v410
        %v412 = vpop.xlane.xlu0 %411
        %v413 = vlog2.pop %v403
        %v414 = vmul.f32 %v413, 0.6931472
        %v415 = vlog2.pop %v406
        %v416 = vmul.f32 %v415, 0.6931472
        %v417 = vlog2.pop %v409
        %v418 = vmul.f32 %v417, 0.6931472
        %v419 = vlog2.pop %v412
        %v420 = vmul.f32 %v419, 0.6931472
        %v421 = vadd.f32 %v379, %v414
        %v422 = vadd.f32 %v382, %v416
        %v423 = vadd.f32 %v385, %v418
        %v424 = vadd.f32 %v388, %v420
        %v425 = vmul.f32 %v317, %v372
        %v426 = vmul.f32 %v318, %v373
        %v427 = vmul.f32 %v319, %v374
        %v428 = vmul.f32 %v320, %v375
        %v429 = vsel %vm376, %v425, 0.0
        %430 = vadd.xlane.f32.xlu0 %v429
        %v431 = vpop.xlane.xlu0 %430
        %v432 = vsel %vm376, %v426, 0.0
        %433 = vadd.xlane.f32.xlu0 %v432
        %v434 = vpop.xlane.xlu0 %433
        %v435 = vsel %vm376, %v427, 0.0
        %436 = vadd.xlane.f32.xlu0 %v435
        %v437 = vpop.xlane.xlu0 %436
        %v438 = vsel %vm376, %v428, 0.0
        %439 = vadd.xlane.f32.xlu0 %v438
        %v440 = vpop.xlane.xlu0 %439
        %v441 = vsub.f32 %v421, %v431
        %v442 = vsub.f32 %v422, %v434
        %v443 = vsub.f32 %v423, %v437
        %v444 = vsub.f32 %v424, %v440
        %v445 = vsub.f32 0.0, %v441
        %v446 = vsub.f32 0.0, %v442
        %v447 = vsub.f32 0.0, %v443
        %v448 = vsub.f32 0.0, %v444
        %v449 = vmul.f32 %v445, 1.442695
        %v450 = vpow.pop %v449
        %v451 = vmul.f32 %v446, 1.442695
        %v452 = vpow.pop %v451
        %v453 = vmul.f32 %v447, 1.442695
        %v454 = vpow.pop %v453
        %v455 = vmul.f32 %v448, 1.442695
        %v456 = vpow.pop %v455
        %v457 = vsub.f32 1.0, %v450
        %v458 = vsub.f32 1.0, %v452
        %v459 = vsub.f32 1.0, %v454
        %v460 = vsub.f32 1.0, %v456
        %v461 = vmul.f32 %v457, 2.0
        %v462 = vmul.f32 %v458, 2.0
        %v463 = vmul.f32 %v459, 2.0
        %v464 = vmul.f32 %v460, 2.0
        %v465 = vmax.f32 %v457, 1e-30
        %v466 = vmax.f32 %v458, 1e-30
        %v467 = vmax.f32 %v459, 1e-30
        %v468 = vmax.f32 %v460, 1e-30
        %v469 = vlog2.pop %v465
        %v470 = vmul.f32 %v469, 0.6931472
        %v471 = vlog2.pop %v466
        %v472 = vmul.f32 %v471, 0.6931472
        %v473 = vlog2.pop %v467
        %v474 = vmul.f32 %v473, 0.6931472
        %v475 = vlog2.pop %v468
        %v476 = vmul.f32 %v475, 0.6931472
        %v477 = vmul.f32 %v461, %v470
        %v478 = vmul.f32 %v462, %v472
        %v479 = vmul.f32 %v463, %v474
        %v480 = vmul.f32 %v464, %v476
        %v481 = vmul.f32 %v477, 1.442695
        %v482 = vpow.pop %v481
        %v483 = vmul.f32 %v478, 1.442695
        %v484 = vpow.pop %v483
        %v485 = vmul.f32 %v479, 1.442695
        %v486 = vpow.pop %v485
        %v487 = vmul.f32 %v480, 1.442695
        %v488 = vpow.pop %v487
        %v489 = vmul.f32 %v482, %v441
        %v490 = vmul.f32 %v484, %v442
        %v491 = vmul.f32 %v486, %v443
        %v492 = vmul.f32 %v488, %v444
        %v493 = vsel %vm338, %v489, 0.0
        %v494 = vsel %vm339, %v490, 0.0
        %v495 = vsel %vm340, %v491, 0.0
        %v496 = vsel %vm341, %v492, 0.0
        %v497 = vld [vmem:[%s259] sm:$0x1]
        %v498 = vsel %vm376, %v372, 0.0
        %v499 = vsel %vm376, %v373, 0.0
        %v500 = vadd.f32 %v498, %v499
        %v501 = vsel %vm376, %v374, 0.0
        %v502 = vadd.f32 %v500, %v501
        %v503 = vsel %vm376, %v375, 0.0
        %v504 = vadd.f32 %v502, %v503
        %v505 = vrot.slane %v504, 4
        %v506 = vadd.f32 %v504, %v505
        %v507 = vrot.slane %v506, 2
        %v508 = vadd.f32 %v506, %v507
        %v509 = vrot.slane %v508, 1
        %v510 = vadd.f32 %v508, %v509
        %v511 = vadd.f32 %v497, %v510
        %vm512 = vcmask 122880
        %513 = vst.msk [vmem:[%s259] sm:$0x1] %vm512, %v511
        %v514 = vld [vmem:[%s265] sm:$0x1]
        %v515 = vmul.f32 %v372, %v493
        %v516 = vmul.f32 %v373, %v494
        %v517 = vmul.f32 %v374, %v495
        %v518 = vmul.f32 %v375, %v496
        %v519 = vsel %vm376, %v515, 0.0
        %v520 = vsel %vm376, %v516, 0.0
        %v521 = vadd.f32 %v519, %v520
        %v522 = vsel %vm376, %v517, 0.0
        %v523 = vadd.f32 %v521, %v522
        %v524 = vsel %vm376, %v518, 0.0
        %v525 = vadd.f32 %v523, %v524
        %v526 = vrot.slane %v525, 4
        %v527 = vadd.f32 %v525, %v526
        %v528 = vrot.slane %v527, 2
        %v529 = vadd.f32 %v527, %v528
        %v530 = vrot.slane %v529, 1
        %v531 = vadd.f32 %v529, %v530
        %v532 = vadd.f32 %v514, %v531
        %533 = vst.msk [vmem:[%s265] sm:$0x1] %vm512, %v532
        %s534 = sand.u32 %s109, 1
        %s535 = scalar_lea.sflag [#allocation3], %s534
        %s536 = sand.u32 %s109, 1
        %s537 = scalar_lea.vmem [#allocation2], %s536
        %s538 = sand.u32 %s135, 1
        %s539 = scalar_lea.sflag [#allocation5], %s538
        %s540 = sand.u32 %s135, 1
        %s541 = scalar_lea.vmem [#allocation4], %s540
        // Predicated region
        $region33: #{tpu_custom_call.1} parent=27 // pred_check
          %p542 = pneg %p119
        $region34: #{tpu_custom_call.1} parent=27 // pred_check_branch
          %544 = sbr.rel (%p542) target = $region36
        $region35: #{tpu_custom_call.1} parent=27 // pred_region
          %546 = vsyncadd %s535, 0
          %s547 = scalar_lea.hbm %s2, %s25
          %s549 = sshll.u32 %s537, 4
          %s550 = int_to_ptr.vmem [resolvable:$true] %s549
          %s551 = sshll.u32 %s547, 4
          %s552 = int_to_ptr.hbm [resolvable:$true] %s551
          %554 = dma.vmem_to_hbm [thread:$0]  %s550, 16, %s552, %s535
        $region36: #{tpu_custom_call.1} parent=27 // pred_fallthru
          _
        // Predicated region
        $region37: #{tpu_custom_call.1} parent=27 // pred_check
          %p555 = pneg %p145
        $region38: #{tpu_custom_call.1} parent=27 // pred_check_branch
          %557 = sbr.rel (%p555) target = $region40
        $region39: #{tpu_custom_call.1} parent=27 // pred_region
          %559 = vsyncadd %s539, 0
          %s560 = scalar_lea.hbm %s3, %s25
          %s562 = sshll.u32 %s541, 4
          %s563 = int_to_ptr.vmem [resolvable:$true] %s562
          %s564 = sshll.u32 %s560, 4
          %s565 = int_to_ptr.hbm [resolvable:$true] %s564
          %567 = dma.vmem_to_hbm [thread:$0]  %s563, 16, %s565, %s539
        $region40: #{tpu_custom_call.1} parent=27 // pred_fallthru
          _
      $region28: #{tpu_custom_call.1} parent=5 // pred_fallthru
        _
      %p568 = scmp.le.s32.totalorder 2, %s16
      // Predicated region
      $region41: #{tpu_custom_call.1} parent=5 // pred_check
        %p569 = pneg %p568
      $region42: #{tpu_custom_call.1} parent=5 // pred_check_branch
        %571 = sbr.rel (%p569) target = $region44
      $region43: #{tpu_custom_call.1} parent=5 // pred_region
        %s572 = ssub.s32 %s16, 2
        // Predicated region
        $region45: #{tpu_custom_call.1} parent=43 // pred_check
          %p573 = pneg %p125
        $region46: #{tpu_custom_call.1} parent=43 // pred_check_branch
          %575 = sbr.rel (%p573) target = $region48
        $region47: #{tpu_custom_call.1} parent=43 // pred_region
          %s576 = sand.u32 %s110, 1
          %s577 = scalar_lea.sflag [#allocation3], %s576
          %s578 = sand.u32 %s110, 1
          %s579 = scalar_lea.vmem [#allocation2], %s578
          %581 = dma.done %s577, 16
        $region48: #{tpu_custom_call.1} parent=43 // pred_fallthru
          _
        // Predicated region
        $region49: #{tpu_custom_call.1} parent=43 // pred_check
          %p582 = pneg %p151
        $region50: #{tpu_custom_call.1} parent=43 // pred_check_branch
          %584 = sbr.rel (%p582) target = $region52
        $region51: #{tpu_custom_call.1} parent=43 // pred_region
          %s585 = sand.u32 %s136, 1
          %s586 = scalar_lea.sflag [#allocation5], %s585
          %s587 = sand.u32 %s136, 1
          %s588 = scalar_lea.vmem [#allocation4], %s587
          %590 = dma.done %s586, 16
        $region52: #{tpu_custom_call.1} parent=43 // pred_fallthru
          _
      $region44: #{tpu_custom_call.1} parent=5 // pred_fallthru
        _
    $region6: #{tpu_custom_call.1} parent=1 // loop_footer
      %s20 = sadd.s32 1, %s16
    $region7: #{tpu_custom_call.1} parent=1 // loop_footer_branch
      %15 = sbr.rel target = $region3
    $region8: #{tpu_custom_call.1} parent=1 // loop_exit
      _
    %591 = vsyncpa [#allocation3], 1
    %s592 = scalar_lea.sflag [#allocation3], 1
    %593 = vsyncpa %s592, 1
    %594 = vsyncpa [#allocation5], 1
    %s595 = scalar_lea.sflag [#allocation5], 1
    %596 = vsyncpa %s595, 1

</llo_original>
